<compile_context>
chip_gen: v5e
topology: v5e:2x2
jax: 0.10.0
libtpu: 0.0.40
codegen_flags: <defaults>
</compile_context>

<pallas_src>
import functools
import math

import jax
import jax.numpy as jnp
from jax import lax
from jax.experimental import pallas as pl
from jax.experimental.pallas import tpu as pltpu

_HALF_LOG_2PI = 0.5 * math.log(2.0 * math.pi)


def _round_up(a, b):
    return ((a + b - 1) // b) * b


def _round_down(a, b):
    return (a // b) * b


def _focal_loss_kernel(x_ref, t_ref, o_ref, *, gamma, br, bs, chunk_rows,
                       n_rows, n_cols, mask_rows, mask_cols):
    """One independent (br, bs) tile -> one (8, 128) partial-sum vreg.

    x_ref, t_ref : (br, bs) VMEM tiles of input / target
    o_ref        : (1, 1, 8, 128) per-block partial sum (written once)
    """
    i = pl.program_id(0)
    j = pl.program_id(1)
    row_base = i * br
    col_base = j * bs
    n_chunks = br // chunk_rows

    def elementwise_loss(xs, ts):
        diff = xs - ts
        logpt = -0.5 * diff * diff - _HALF_LOG_2PI
        # --- gamma specialization (trace-time Python dispatch) ---
        if gamma == 0.0:
            return -logpt                      # (1-pt)^0 == 1: no exp, no pow
        pt = jnp.exp(logpt)
        omp = 1.0 - pt
        if gamma > 0 and float(int(gamma)) == float(gamma):
            # Integer gamma: repeated multiplies (pure VPU), avoids the
            # float-pow (exp+log) path on the single EUP slot.
            w = omp
            for _ in range(int(gamma) - 1):
                w = w * omp
        else:
            w = omp ** gamma
        return -w * logpt

    def body(g, acc):
        # Chunked loads bound the live range to ~chunk_rows*bs/1024 vregs.
        r0 = pl.multiple_of(g * chunk_rows, chunk_rows)
        xs = x_ref[pl.ds(r0, chunk_rows), :].astype(jnp.float32)
        ts = t_ref[pl.ds(r0, chunk_rows), :].astype(jnp.float32)
        loss = elementwise_loss(xs, ts)

        # Mask only emitted when the slab is ragged (partial trailing blocks).
        if mask_rows or mask_cols:
            valid = None
            if mask_rows:
                rr = row_base + r0 + lax.broadcasted_iota(
                    jnp.int32, (chunk_rows, bs), 0)
                valid = rr < n_rows
            if mask_cols:
                cc = col_base + lax.broadcasted_iota(
                    jnp.int32, (chunk_rows, bs), 1)
                vc = cc < n_cols
                valid = vc if valid is None else jnp.logical_and(valid, vc)
            loss = jnp.where(valid, loss, 0.0)

        # Fold chunk_rows down to 8 sublanes: pure elementwise vreg adds.
        part = loss[0:8, :]
        for s in range(1, chunk_rows // 8):
            part = part + loss[s * 8:(s + 1) * 8, :]
        return acc + part

    acc = lax.fori_loop(0, n_chunks, body,
                        jnp.zeros((8, bs), jnp.float32),
                        unroll=(n_chunks <= 64))

    # Fold lanes down to one (8,128) vreg: 128-aligned lane slices are whole
    # vregs, so these are plain VPU adds (no XLU).
    out = acc[:, 0:128]
    for s in range(1, bs // 128):
        out = out + acc[:, s * 128:(s + 1) * 128]
    o_ref[0, 0, :, :] = out


def _focal_loss_elementwise_jax(x, t, gamma):
    diff = x - t
    logpt = -0.5 * diff * diff - _HALF_LOG_2PI
    pt = jnp.exp(logpt)
    return -1.0 * (1.0 - pt) ** gamma * logpt


def focal_loss(x, target, *, gamma=0.0, size_average=True,
               block_rows=512, block_lanes=1024, vmem_limit_bytes=None):
    """Pallas TPU implementation of FocalLoss.forward (active code path).

    block_rows/block_lanes control the per-input tile (bytes = rows*lanes*4);
    defaults (512, 1024) = 2 MiB fit every generation's default scoped VMEM.
    v6e may use (1024, 1024); on v7x keep total pipelined VMEM <= ~48-56 MiB.
    Inputs may be bf16 (halves HBM traffic); compute is always f32 in-kernel.
    """
    assert x.shape == target.shape, "input and target must have the same shape"
    assert x.ndim >= 2, "FocalLoss expects at least (N, C) inputs"
    N, C = x.shape[0], x.shape[1]
    total = x.size
    scale = (1.0 / (N * C)) if size_average else (1.0 / C)

    # Free (copy-less) 2-D view of the element stream: rows = N*C, cols = spatial.
    if x.ndim > 2:
        R = N * C
        S = total // R
    else:
        R, S = N, C
    x2 = x.reshape(R, S)
    t2 = target.reshape(R, S)

    if R < 8 or S < 128:
        # TODO(synk): degenerate slabs smaller than one (8,128) tile use the
        # plain-JAX path (negligible work, not worth a kernel launch).
        loss = _focal_loss_elementwise_jax(
            x2.astype(jnp.float32), t2.astype(jnp.float32), float(gamma))
        return jnp.sum(loss) * jnp.float32(scale)

    # --- hardware-aligned block sizes; no wrapper-side padding ---
    br = max(8, min(_round_down(int(block_rows), 8), _round_down(R, 8)))
    bs = max(128, min(_round_down(int(block_lanes), 128), _round_down(S, 128)))
    grid_r = pl.cdiv(R, br)
    grid_c = pl.cdiv(S, bs)

    # v7x megacore: guarantee >= 2 grid blocks whenever the input allows it
    # (free on single-TC v5e/v6e).
    if grid_r * grid_c == 1:
        if R >= 16:
            br = max(8, _round_up(pl.cdiv(R, 2), 8))
        elif S >= 256:
            bs = max(128, _round_up(pl.cdiv(S, 2), 128))
        grid_r = pl.cdiv(R, br)
        grid_c = pl.cdiv(S, bs)

    mask_rows = (R % br) != 0
    mask_cols = (S % bs) != 0
    chunk_rows = 16 if br % 16 == 0 else 8

    kernel = functools.partial(
        _focal_loss_kernel,
        gamma=float(gamma), br=br, bs=bs, chunk_rows=chunk_rows,
        n_rows=R, n_cols=S, mask_rows=mask_rows, mask_cols=mask_cols)

    cp_kwargs = dict(dimension_semantics=("parallel", "parallel"))
    if vmem_limit_bytes is not None:
        cp_kwargs["vmem_limit_bytes"] = int(vmem_limit_bytes)

    partials = pl.pallas_call(
        kernel,
        out_shape=jax.ShapeDtypeStruct((grid_r, grid_c, 8, 128), jnp.float32),
        grid_spec=pltpu.PrefetchScalarGridSpec(
            num_scalar_prefetch=0,
            grid=(grid_r, grid_c),
            in_specs=[
                pl.BlockSpec((br, bs), lambda i, j: (i, j)),
                pl.BlockSpec((br, bs), lambda i, j: (i, j)),
            ],
            # One lane-dense (8,128) vreg per block -> unmasked, aligned stores.
            out_specs=pl.BlockSpec((1, 1, 8, 128), lambda i, j: (i, j, 0, 0)),
        ),
        compiler_params=pltpu.CompilerParams(**cp_kwargs),
    )(x2, t2)

    # Tiny final reduction + scale in plain JAX (linear-reduction collapse).
    return jnp.sum(partials) * jnp.float32(scale)


def focal_loss_ref(x, target, *, gamma=0.0, size_average=True):
    """Pure-JAX reference mirroring the PyTorch forward exactly."""
    diff = x - target
    logpt = -0.5 * diff ** 2 - 0.5 * jnp.log(2.0 * jnp.pi)
    pt = jnp.exp(logpt)
    loss = -1.0 * (1.0 - pt) ** gamma * logpt
    loss = loss.reshape(loss.shape[0], x.shape[1], -1).sum(axis=-1)  # (N, C)
    loss = loss.mean(axis=-1)                                        # (N,)
    return loss.mean() if size_average else loss.sum()


if __name__ == "__main__":
    # FocalLoss(gamma=2.0, alpha=None, size_average=True)
    # (alpha is unused by the active forward path.)
    gamma = 2.0
    size_average = True

    key = jax.random.PRNGKey(0)
    kx, kt = jax.random.split(key)
    N, C, H, W = 2, 4, 16, 16
    x = jax.random.normal(kx, (N, C, H, W), dtype=jnp.float32)
    target = jax.random.normal(kt, (N, C, H, W), dtype=jnp.float32)

    out = focal_loss(x, target, gamma=gamma, size_average=size_average)
    out = jax.block_until_ready(out)

    ref = focal_loss_ref(x, target, gamma=gamma, size_average=size_average)
    assert jnp.allclose(out, ref, rtol=1e-5, atol=1e-5), (out, ref)

    print("KERNEL_OK")
</pallas_src>

<mosaic_0001>
module attributes {stable_mosaic.version = 11 : i64} {
  func.func @_focal_loss_kernel(%arg0: i32, %arg1: i32, %arg2: memref<8x128xf32, #tpu.memory_space<vmem>>, %arg3: memref<8x128xf32, #tpu.memory_space<vmem>>, %arg4: memref<1x1x8x128xf32, #tpu.memory_space<vmem>>) attributes {dimension_semantics = [#tpu.dimension_semantics<parallel>, #tpu.dimension_semantics<parallel>], iteration_bounds = array<i64: 1, 2>, scalar_prefetch = 0 : i64, scratch_operands = 0 : i64, tpu.core_type = #tpu.core_type<tc>, window_params = [{transform_indices = @transform_0, window_bounds = array<i64: 8, 128>}, {transform_indices = @transform_1, window_bounds = array<i64: 8, 128>}, {transform_indices = @transform_2, window_bounds = array<i64: 1, 1, 8, 128>}]} {
    %cst = arith.constant 0.000000e+00 : f32
    %0 = vector.broadcast %cst : f32 to vector<8x128xf32>
    %c0_i32 = arith.constant 0 : i32
    %c8_i32 = arith.constant 8 : i32
    %1 = arith.muli %c0_i32, %c8_i32 : i32
    %2 = tpu.assume_multiple %1, 8 : i32
    %3 = arith.index_cast %2 : i32 to index
    %c0 = arith.constant 0 : index
    %4 = vector.load %arg2[%3, %c0] : memref<8x128xf32, #tpu.memory_space<vmem>>, vector<8x128xf32>
    %5 = arith.index_cast %2 : i32 to index
    %c0_0 = arith.constant 0 : index
    %6 = vector.load %arg3[%5, %c0_0] : memref<8x128xf32, #tpu.memory_space<vmem>>, vector<8x128xf32>
    %7 = arith.subf %4, %6 : vector<8x128xf32>
    %cst_1 = arith.constant -5.000000e-01 : f32
    %8 = vector.broadcast %cst_1 : f32 to vector<8x128xf32>
    %9 = arith.mulf %8, %7 : vector<8x128xf32>
    %10 = arith.mulf %9, %7 : vector<8x128xf32>
    %cst_2 = arith.constant 0.918938517 : f32
    %11 = vector.broadcast %cst_2 : f32 to vector<8x128xf32>
    %12 = arith.subf %10, %11 : vector<8x128xf32>
    %13 = math.exp %12 : vector<8x128xf32>
    %cst_3 = arith.constant 1.000000e+00 : f32
    %14 = vector.broadcast %cst_3 : f32 to vector<8x128xf32>
    %15 = arith.subf %14, %13 : vector<8x128xf32>
    %16 = arith.mulf %15, %15 : vector<8x128xf32>
    %cst_4 = arith.constant 0.000000e+00 : f32
    %17 = vector.broadcast %cst_4 : f32 to vector<8x128xf32>
    %18 = arith.subf %17, %16 : vector<8x128xf32>
    %19 = arith.mulf %18, %12 : vector<8x128xf32>
    %20 = arith.addf %0, %19 : vector<8x128xf32>
    %c1_i32 = arith.constant 1 : i32
    %c0_5 = arith.constant 0 : index
    %c0_6 = arith.constant 0 : index
    %c0_7 = arith.constant 0 : index
    %c0_8 = arith.constant 0 : index
    %21 = vector.load %arg4[%c0_5, %c0_6, %c0_7, %c0_8] : memref<1x1x8x128xf32, #tpu.memory_space<vmem>>, vector<1x1x8x128xf32>
    %22 = vector.shape_cast %21 : vector<1x1x8x128xf32> to vector<8x128xf32>
    %23 = vector.shape_cast %20 : vector<8x128xf32> to vector<1x1x8x128xf32>
    tpu.vector_store %arg4[%c0_5, %c0_6, %c0_7, %c0_8], %23 {strides = array<i32>} : memref<1x1x8x128xf32, #tpu.memory_space<vmem>>, vector<1x1x8x128xf32>,
    return
  }
  func.func @transform_0(%arg0: i32, %arg1: i32) -> (i32, i32) {
    %c0_i32 = arith.constant 0 : i32
    return %arg0, %arg1 : i32, i32
  }
  func.func @transform_1(%arg0: i32, %arg1: i32) -> (i32, i32) {
    %c0_i32 = arith.constant 0 : i32
    return %arg0, %arg1 : i32, i32
  }
  func.func @transform_2(%arg0: i32, %arg1: i32) -> (i32, i32, i32, i32) {
    %c0_i32 = arith.constant 0 : i32
    %c0_i32_0 = arith.constant 0 : i32
    %c0_i32_1 = arith.constant 0 : i32
    return %arg0, %arg1, %c0_i32, %c0_i32_0 : i32, i32, i32, i32
  }
}

</mosaic_0001>

<llo_original>
// kernel: tpu_custom_call.1
$region0: #{tpu_custom_call.1}
  #allocation0 [shape = 'u32[]', space=smem, size = 0x4, offset = 0x4, fixed_abs, tag = 'smem constant byte address 0x4 - core index']
  #allocation1 [shape = 'u32[72,128]{1,0:T(1,128)}', space=vmem, size = 0x9000, scoped, tag = 'internal scratch']
  %s0 = inlined_call_operand.hbm [shape: f32[8,256], index: 0, kind: input, shape index: {}]
  %s1 = inlined_call_operand.hbm [shape: f32[8,256], index: 1, kind: input, shape index: {}]
  %s2 = inlined_call_operand.hbm [shape: f32[1,2,8,128], index: 2, kind: output, shape index: {}]
  %s3 = sld [smem:[#allocation0]]
  $region49: #{tpu_custom_call.1} parent=0
    _
  %s5 = ssub.s32 1, %s3
  %s6 = scalar_select 0, %s5, %s3
  $region1: #{tpu_custom_call.1} parent=0
    #allocation2 [shape = 'u8[8192]{0}', space=vmem, size = 0x2000, scoped, tag = 'input window, operand 0']
    #allocation3 [shape = 's32[2]{0}', space=sflag, size = 0x8, scoped, tag = 'scoped memory for tpu_custom_call.1']
    #allocation4 [shape = 's32[2]{0}', space=sflag, size = 0x8, scoped, tag = 'scoped memory for tpu_custom_call.1']
    #allocation5 [shape = 'u8[8192]{0}', space=vmem, size = 0x2000, scoped, tag = 'input window, operand 1']
    #allocation6 [shape = 's32[2]{0}', space=sflag, size = 0x8, scoped, tag = 'scoped memory for tpu_custom_call.1']
    #allocation7 [shape = 'u8[8192]{0}', space=vmem, size = 0x2000, scoped, tag = 'output window, operand 0']
    %7 = vsyncpa [#allocation3], 0
    %s8 = scalar_lea.sflag [#allocation3], 1
    %9 = vsyncpa %s8, 0
    %10 = vsyncpa [#allocation6], 0
    %s11 = scalar_lea.sflag [#allocation6], 1
    %12 = vsyncpa %s11, 0
    %13 = vsyncpa [#allocation4], 0
    %s14 = scalar_lea.sflag [#allocation4], 1
    %15 = vsyncpa %s14, 0
    loop: start=0, step=1, limit=4
    $region2: #{tpu_custom_call.1} parent=1 // loop_pre_header
      _
    $region3: #{tpu_custom_call.1} parent=1 // loop_header
      %s17 = sphi 0, %s21
      %p18 = scmp.ge.s32.totalorder %s17, 4
      %s24 = sphi 0, %s36
      %s25 = sphi 0, %s32
      %s26 = sphi 0, %s24
      %s27 = sphi 0, %s25
      %s28 = sphi 0, %s26
      %s29 = sphi 0, %s27
      %s41 = sphi 0, %s43
      %s44 = sphi 0, %s41
      %s45 = sphi 0, %s44
      %s61 = sphi 0, %s45
      %s69 = sphi 0, %s71
      %s72 = sphi 0, %s69
      %s73 = sphi 0, %s72
      %s89 = sphi 0, %s73
      %s97 = sphi 0, %s99
      %s100 = sphi 0, %s97
      %s101 = sphi 0, %s100
      %s117 = sphi 0, %s101
    $region4: #{tpu_custom_call.1} parent=1 // loop_header_branch
      %20 = sbr.rel (%p18) target = $region8
    $region5: #{tpu_custom_call.1} parent=1 // loop_body
      %s22 = ssub.s32 %s17, 1
      %s23 = ssub.s32 %s17, 2
      %s30 = sadd.s32 1, %s25
      %p31 = scmp.ge.s32.totalorder %s30, 2
      %s32 = scalar_select %p31, 0, %s30
      %s33 = sadd.s32 1, %s24
      %s34 = scalar_select %p31, %s33, %s24
      %p35 = scmp.ge.s32.totalorder %s34, 1
      %s36 = scalar_select %p35, 0, %s34
      %s37 = ssub.s32 %s24, %s36
      %s38 = ssub.s32 %s25, %s32
      %s39 = sor.u32 %s37, %s38
      %p40 = scmp.eq.s32.totalorder %s39, 0
      %s42 = sadd.s32 %s41, 1
      %s43 = scalar_select %p40, %s41, %s42
      %p46 = pneg %p40
      %p47 = scmp.eq.s32.totalorder %s17, 1
      %p48 = por %p46, %p47
      %p49 = scmp.ne.s32.totalorder %s41, %s44
      %p50 = scmp.eq.s32.totalorder %s17, 0
      %p51 = por %p49, %p50
      %p52 = scmp.ne.s32.totalorder %s41, %s44
      %p53 = scmp.eq.s32.totalorder %s22, 1
      %p54 = por %p52, %p53
      %p55 = scmp.ne.s32.totalorder %s44, %s45
      %p56 = scmp.eq.s32.totalorder %s22, 0
      %p57 = por %p55, %p56
      %p58 = scmp.ne.s32.totalorder %s44, %s45
      %p59 = scmp.eq.s32.totalorder %s23, 1
      %p60 = por %p58, %p59
      %p62 = scmp.ne.s32.totalorder %s45, %s61
      %p63 = scmp.eq.s32.totalorder %s23, 0
      %p64 = por %p62, %p63
      %s65 = ssub.s32 %s24, %s36
      %s66 = ssub.s32 %s25, %s32
      %s67 = sor.u32 %s65, %s66
      %p68 = scmp.eq.s32.totalorder %s67, 0
      %s70 = sadd.s32 %s69, 1
      %s71 = scalar_select %p68, %s69, %s70
      %p74 = pneg %p68
      %p75 = scmp.eq.s32.totalorder %s17, 1
      %p76 = por %p74, %p75
      %p77 = scmp.ne.s32.totalorder %s69, %s72
      %p78 = scmp.eq.s32.totalorder %s17, 0
      %p79 = por %p77, %p78
      %p80 = scmp.ne.s32.totalorder %s69, %s72
      %p81 = scmp.eq.s32.totalorder %s22, 1
      %p82 = por %p80, %p81
      %p83 = scmp.ne.s32.totalorder %s72, %s73
      %p84 = scmp.eq.s32.totalorder %s22, 0
      %p85 = por %p83, %p84
      %p86 = scmp.ne.s32.totalorder %s72, %s73
      %p87 = scmp.eq.s32.totalorder %s23, 1
      %p88 = por %p86, %p87
      %p90 = scmp.ne.s32.totalorder %s73, %s89
      %p91 = scmp.eq.s32.totalorder %s23, 0
      %p92 = por %p90, %p91
      %s93 = ssub.s32 %s24, %s36
      %s94 = ssub.s32 %s25, %s32
      %s95 = sor.u32 %s93, %s94
      %p96 = scmp.eq.s32.totalorder %s95, 0
      %s98 = sadd.s32 %s97, 1
      %s99 = scalar_select %p96, %s97, %s98
      %p102 = pneg %p96
      %p103 = scmp.eq.s32.totalorder %s17, 1
      %p104 = por %p102, %p103
      %p105 = scmp.ne.s32.totalorder %s97, %s100
      %p106 = scmp.eq.s32.totalorder %s17, 0
      %p107 = por %p105, %p106
      %p108 = scmp.ne.s32.totalorder %s97, %s100
      %p109 = scmp.eq.s32.totalorder %s22, 1
      %p110 = por %p108, %p109
      %p111 = scmp.ne.s32.totalorder %s100, %s101
      %p112 = scmp.eq.s32.totalorder %s22, 0
      %p113 = por %p111, %p112
      %p114 = scmp.ne.s32.totalorder %s100, %s101
      %p115 = scmp.eq.s32.totalorder %s23, 1
      %p116 = por %p114, %p115
      %p118 = scmp.ne.s32.totalorder %s101, %s117
      %p119 = scmp.eq.s32.totalorder %s23, 0
      %p120 = por %p118, %p119
      %p121 = scmp.le.s32.totalorder 1, %s17
      %p122 = scmp.lt.s32.totalorder %s17, 3
      %p123 = pnand %p121, %p122
      %p124 = pneg %p123
      // Predicated region
      $region9: #{tpu_custom_call.1} parent=5 // pred_check
        _
      $region10: #{tpu_custom_call.1} parent=5 // pred_check_branch
        %126 = sbr.rel (%p123) target = $region12
      $region11: #{tpu_custom_call.1} parent=5 // pred_region
        %s127 = ssub.s32 %s17, 1
      $region12: #{tpu_custom_call.1} parent=5 // pred_fallthru
        _
      %p128 = scmp.lt.s32.totalorder %s17, 2
      // Predicated region
      $region13: #{tpu_custom_call.1} parent=5 // pred_check
        %p129 = pneg %p128
      $region14: #{tpu_custom_call.1} parent=5 // pred_check_branch
        %131 = sbr.rel (%p129) target = $region16
      $region15: #{tpu_custom_call.1} parent=5 // pred_region
        // Predicated region
        $region17: #{tpu_custom_call.1} parent=15 // pred_check
          %p132 = pneg %p51
        $region18: #{tpu_custom_call.1} parent=15 // pred_check_branch
          %134 = sbr.rel (%p132) target = $region20
        $region19: #{tpu_custom_call.1} parent=15 // pred_region
          %s135 = sand.u32 %s41, 1
          %s136 = scalar_lea.sflag [#allocation3], %s135
          %s137 = sand.u32 %s41, 1
          %s138 = smul.addr %s137, 8
          %s139 = scalar_lea.vmem [#allocation2], %s138
          %141 = vsyncadd %s136, 0
          %s142 = smul.addr %s24, 2
          %s143 = sadd.s32 %s25, %s142
          %s144 = smul.addr %s143, 8
          %s145 = scalar_lea.hbm %s0, %s144
          %s147 = sshll.u32 %s145, 4
          %s148 = int_to_ptr.hbm [resolvable:$true] %s147
          %s149 = sshll.u32 %s139, 4
          %s150 = int_to_ptr.vmem [resolvable:$true] %s149
          %152 = dma.hbm_to_vmem [thread:$0]  %s148, 128, %s150, %s136
        $region20: #{tpu_custom_call.1} parent=15 // pred_fallthru
          _
        // Predicated region
        $region21: #{tpu_custom_call.1} parent=15 // pred_check
          %p153 = pneg %p79
        $region22: #{tpu_custom_call.1} parent=15 // pred_check_branch
          %155 = sbr.rel (%p153) target = $region24
        $region23: #{tpu_custom_call.1} parent=15 // pred_region
          %s156 = sand.u32 %s69, 1
          %s157 = scalar_lea.sflag [#allocation6], %s156
          %s158 = sand.u32 %s69, 1
          %s159 = smul.addr %s158, 8
          %s160 = scalar_lea.vmem [#allocation5], %s159
          %162 = vsyncadd %s157, 0
          %s163 = smul.addr %s24, 2
          %s164 = sadd.s32 %s25, %s163
          %s165 = smul.addr %s164, 8
          %s166 = scalar_lea.hbm %s1, %s165
          %s168 = sshll.u32 %s166, 4
          %s169 = int_to_ptr.hbm [resolvable:$true] %s168
          %s170 = sshll.u32 %s160, 4
          %s171 = int_to_ptr.vmem [resolvable:$true] %s170
          %173 = dma.hbm_to_vmem [thread:$0]  %s169, 128, %s171, %s157
        $region24: #{tpu_custom_call.1} parent=15 // pred_fallthru
          _
      $region16: #{tpu_custom_call.1} parent=5 // pred_fallthru
        _
      %p174 = scmp.le.s32.totalorder 1, %s17
      %p175 = scmp.lt.s32.totalorder %s17, 3
      %p176 = pnand %p174, %p175
      %p177 = pneg %p176
      // Predicated region
      $region25: #{tpu_custom_call.1} parent=5 // pred_check
        _
      $region26: #{tpu_custom_call.1} parent=5 // pred_check_branch
        %179 = sbr.rel (%p176) target = $region28
      $region27: #{tpu_custom_call.1} parent=5 // pred_region
        %s180 = ssub.s32 %s17, 1
        %s181 = sand.u32 %s44, 1
        %s182 = scalar_lea.sflag [#allocation3], %s181
        %s183 = sand.u32 %s44, 1
        %s184 = smul.addr %s183, 8
        %s185 = scalar_lea.vmem [#allocation2], %s184
        // Predicated region
        $region29: #{tpu_custom_call.1} parent=27 // pred_check
          %p186 = pneg %p57
        $region30: #{tpu_custom_call.1} parent=27 // pred_check_branch
          %188 = sbr.rel (%p186) target = $region32
        $region31: #{tpu_custom_call.1} parent=27 // pred_region
          %190 = dma.done %s182, 128
        $region32: #{tpu_custom_call.1} parent=27 // pred_fallthru
          _
        %s191 = sand.u32 %s72, 1
        %s192 = scalar_lea.sflag [#allocation6], %s191
        %s193 = sand.u32 %s72, 1
        %s194 = smul.addr %s193, 8
        %s195 = scalar_lea.vmem [#allocation5], %s194
        // Predicated region
        $region33: #{tpu_custom_call.1} parent=27 // pred_check
          %p196 = pneg %p85
        $region34: #{tpu_custom_call.1} parent=27 // pred_check_branch
          %198 = sbr.rel (%p196) target = $region36
        $region35: #{tpu_custom_call.1} parent=27 // pred_region
          %200 = dma.done %s192, 128
        $region36: #{tpu_custom_call.1} parent=27 // pred_fallthru
          _
        %s201 = sand.u32 %s44, 1
        %s202 = scalar_lea.sflag [#allocation3], %s201
        %s203 = sand.u32 %s44, 1
        %s204 = smul.addr %s203, 8
        %s205 = scalar_lea.vmem [#allocation2], %s204
        %p206 = pneg %p57
        %p207 = pneg %p54
        %s208 = sand.u32 %s72, 1
        %s209 = scalar_lea.sflag [#allocation6], %s208
        %s210 = sand.u32 %s72, 1
        %s211 = smul.addr %s210, 8
        %s212 = scalar_lea.vmem [#allocation5], %s211
        %p213 = pneg %p85
        %p214 = pneg %p82
        %p215 = pneg %p113
        %p216 = pneg %p110
        %s217 = sand.u32 %s100, 1
        %s218 = scalar_lea.sflag [#allocation4], %s217
        %s219 = sand.u32 %s100, 1
        %s220 = smul.addr %s219, 8
        %s221 = scalar_lea.vmem [#allocation7], %s220
        %v222 = vld [vmem:[%s185] sm:$0xff]
        %v223 = vld [vmem:[%s195] sm:$0xff]
        %v224 = vsub.f32 %v222, %v223
        %v225 = vmul.f32 %v224, -0.5
        %v226 = vmul.f32 %v225, %v224
        %v227 = vsub.f32 %v226, 0.9189385
        %v228 = vmul.f32 %v227, 1.442695
        %v229 = vpow.pop %v228
        %v230 = vsub.f32 1.0, %v229
        %v231 = vmul.f32 %v230, %v230
        %v232 = vsub.f32 0.0, %v231
        %v233 = vmul.f32 %v232, %v227
        %v234 = vadd.f32 %v233, 0.0
        %235 = vst [vmem:[%s221] sm:$0xff] %v234
        %s236 = sand.u32 %s100, 1
        %s237 = scalar_lea.sflag [#allocation4], %s236
        %s238 = sand.u32 %s100, 1
        %s239 = smul.addr %s238, 8
        %s240 = scalar_lea.vmem [#allocation7], %s239
        // Predicated region
        $region37: #{tpu_custom_call.1} parent=27 // pred_check
          %p241 = pneg %p110
        $region38: #{tpu_custom_call.1} parent=27 // pred_check_branch
          %243 = sbr.rel (%p241) target = $region40
        $region39: #{tpu_custom_call.1} parent=27 // pred_region
          %245 = vsyncadd %s237, 0
          %s246 = smul.addr %s26, 2
          %s247 = sadd.s32 %s27, %s246
          %s248 = smul.addr %s247, 8
          %s249 = scalar_lea.hbm %s2, %s248
          %s251 = sshll.u32 %s240, 4
          %s252 = int_to_ptr.vmem [resolvable:$true] %s251
          %s253 = sshll.u32 %s249, 4
          %s254 = int_to_ptr.hbm [resolvable:$true] %s253
          %256 = dma.vmem_to_hbm [thread:$0]  %s252, 128, %s254, %s237
        $region40: #{tpu_custom_call.1} parent=27 // pred_fallthru
          _
      $region28: #{tpu_custom_call.1} parent=5 // pred_fallthru
        _
      %p257 = scmp.le.s32.totalorder 2, %s17
      // Predicated region
      $region41: #{tpu_custom_call.1} parent=5 // pred_check
        %p258 = pneg %p257
      $region42: #{tpu_custom_call.1} parent=5 // pred_check_branch
        %260 = sbr.rel (%p258) target = $region44
      $region43: #{tpu_custom_call.1} parent=5 // pred_region
        %s261 = ssub.s32 %s17, 2
        // Predicated region
        $region45: #{tpu_custom_call.1} parent=43 // pred_check
          %p262 = pneg %p116
        $region46: #{tpu_custom_call.1} parent=43 // pred_check_branch
          %264 = sbr.rel (%p262) target = $region48
        $region47: #{tpu_custom_call.1} parent=43 // pred_region
          %s265 = sand.u32 %s101, 1
          %s266 = scalar_lea.sflag [#allocation4], %s265
          %s267 = sand.u32 %s101, 1
          %s268 = smul.addr %s267, 8
          %s269 = scalar_lea.vmem [#allocation7], %s268
          %271 = dma.done %s266, 128
        $region48: #{tpu_custom_call.1} parent=43 // pred_fallthru
          _
      $region44: #{tpu_custom_call.1} parent=5 // pred_fallthru
        _
    $region6: #{tpu_custom_call.1} parent=1 // loop_footer
      %s21 = sadd.s32 1, %s17
    $region7: #{tpu_custom_call.1} parent=1 // loop_footer_branch
      %16 = sbr.rel target = $region3
    $region8: #{tpu_custom_call.1} parent=1 // loop_exit
      _
    %272 = vsyncpa [#allocation3], 1
    %s273 = scalar_lea.sflag [#allocation3], 1
    %274 = vsyncpa %s273, 1
    %275 = vsyncpa [#allocation6], 1
    %s276 = scalar_lea.sflag [#allocation6], 1
    %277 = vsyncpa %s276, 1
    %278 = vsyncpa [#allocation4], 1
    %s279 = scalar_lea.sflag [#allocation4], 1
    %280 = vsyncpa %s279, 1

</llo_original>
